<compile_context>
chip_gen: v5e
topology: v5e:2x2
jax: 0.10.0
libtpu: 0.0.40
codegen_flags: <defaults>
</compile_context>

<pallas_src>
import jax
import jax.numpy as jnp
from jax.experimental import pallas as pl
from jax.experimental.pallas import tpu as pltpu

NUM_HIDDEN = 8


def _round_up(n, m):
    return ((n + m - 1) // m) * m


def _block_diag(w, pack):
    """kron(I_pack, w): `pack` copies of w on the diagonal."""
    if pack == 1:
        return w
    return jnp.kron(jnp.eye(pack, dtype=w.dtype), w)


def _make_kernel(num_hidden, n_sub):
    def kernel(x_ref, w_in_ref, b_in_ref, w_h_ref, b_h_ref,
               w_out_ref, b_out_ref, o_ref):
        bf16 = jnp.bfloat16
        rows = x_ref.shape[0]
        sub = rows // n_sub

        w_in = w_in_ref[...]            # (pack*d_in, pack*H) bf16
        b_in = b_in_ref[...]            # (1, pack*H) f32

        # n_sub independent sub-tiles; their data-dependent layer chains are
        # emitted interleaved so one chain's MXU work hides the other's MRF
        # latency + VPU epilogue.
        hs = []
        for s in range(n_sub):
            xs = x_ref[s * sub:(s + 1) * sub, :].astype(bf16)   # in-kernel cast
            h = jnp.dot(xs, w_in, preferred_element_type=jnp.float32)
            hs.append(jnp.maximum(h + b_in, 0.0))               # (sub, pack*H) f32

        for i in range(num_hidden):     # static unroll: num_hidden is compile-time
            w = w_h_ref[i]              # (pack*H, pack*H) bf16, block-diagonal
            b = b_h_ref[i]              # (1, pack*H) f32
            outs = [jnp.dot(h.astype(bf16), w, preferred_element_type=jnp.float32)
                    for h in hs]
            hs = [jnp.maximum(o + b, 0.0) + h for o, h in zip(outs, hs)]  # skip

        w_out = w_out_ref[...]          # (pack*H, pack*out_dim) bf16, block-diag
        b_out = b_out_ref[...]          # (1, pack*out_dim) f32
        for s, h in enumerate(hs):
            y = jnp.dot(h.astype(bf16), w_out,
                        preferred_element_type=jnp.float32) + b_out
            o_ref[s * sub:(s + 1) * sub, :] = y.astype(o_ref.dtype)

    return kernel


def residual_net_forward(x, w_in, b_in, w_h, b_h, w_out, b_out, *, tile_b=4096):
    B, d_in = x.shape
    H = w_in.shape[1]
    out_dim = w_out.shape[1]
    num_hidden = w_h.shape[0]

    # Lane-packing factor: pack `pack` batch rows per lane row so the feature
    # axis fills all 128 lanes (H=32 -> pack=4).  Falls back to 1 otherwise.
    pack = 128 // H if (H < 128 and 128 % H == 0) else 1

    # One-time weight prep: block-diagonal bf16 weights, lane-tiled f32 biases.
    w_in_bd = _block_diag(w_in, pack).astype(jnp.bfloat16)      # (pack*d_in, pack*H)
    w_h_bd = jnp.stack([_block_diag(w_h[i], pack)
                        for i in range(num_hidden)]).astype(jnp.bfloat16)
    w_out_bd = _block_diag(w_out, pack).astype(jnp.bfloat16)    # (pack*H, pack*out)
    b_in_t = jnp.tile(b_in, (1, pack))                          # (1, pack*H)
    b_h_t = jnp.tile(b_h, (1, 1, pack))                         # (nh, 1, pack*H)
    b_out_t = jnp.tile(b_out, (1, pack))                        # (1, pack*out)

    # Batch tiling: 128-row granularity; prefer >=4 grid steps on big batches
    # (v7x megacore + pipelining) but never tiles < 512 rows, > tile_b, or
    # larger than the (rounded) batch itself.
    b128 = _round_up(max(B, 1), 128)
    tb = max(128, min(tile_b,
                      max(512, _round_up(-(-b128 // 4), 128)),
                      b128))
    Bp = _round_up(b128, tb)

    # Pad batch (pad rows stay finite through the blocks, sliced off below) and
    # lane-pack x: (Bp, d_in) -> (Bp/pack, pack*d_in) is a contiguous reshape.
    # x stays f32 in HBM; the bf16 cast happens inside the kernel.
    x_p = jnp.pad(x, ((0, Bp - B), (0, 0))) if Bp != B else x
    x_p = x_p.reshape(Bp // pack, pack * d_in)

    rows = tb // pack
    n_sub = 2 if (rows % 16 == 0 and rows >= 16) else 1
    grid = (Bp // tb,)

    flops = 2 * Bp * (d_in * H + num_hidden * H * H + H * out_dim)
    bytes_accessed = (x_p.size * 4
                      + (w_in_bd.size + w_h_bd.size + w_out_bd.size) * 2
                      + (b_in_t.size + b_h_t.size + b_out_t.size) * 4
                      + Bp * out_dim * 4)

    out = pl.pallas_call(
        _make_kernel(num_hidden, n_sub),
        out_shape=jax.ShapeDtypeStruct((Bp // pack, pack * out_dim), jnp.float32),
        grid=grid,
        in_specs=[
            pl.BlockSpec((rows, pack * d_in), lambda i: (i, 0)),   # x: batch-tiled
            pl.BlockSpec(w_in_bd.shape, lambda i: (0, 0)),         # weights: resident
            pl.BlockSpec(b_in_t.shape, lambda i: (0, 0)),
            pl.BlockSpec(w_h_bd.shape, lambda i: (0, 0, 0)),
            pl.BlockSpec(b_h_t.shape, lambda i: (0, 0, 0)),
            pl.BlockSpec(w_out_bd.shape, lambda i: (0, 0)),
            pl.BlockSpec(b_out_t.shape, lambda i: (0, 0)),
        ],
        out_specs=pl.BlockSpec((rows, pack * out_dim), lambda i: (i, 0)),
        compiler_params=pltpu.CompilerParams(
            dimension_semantics=("parallel",)),
        cost_estimate=pl.CostEstimate(flops=flops, transcendentals=0,
                                      bytes_accessed=bytes_accessed),
    )(x_p, w_in_bd, b_in_t, w_h_bd, b_h_t, w_out_bd, b_out_t)

    # Un-pack: (Bp/pack, pack*out_dim) row-major == (Bp, out_dim); drop padding.
    return out.reshape(Bp, out_dim)[:B]


def init_params(key, input_dim, hidden_dim, output_dim, num_hidden):
    """Deterministic init (uniform like PyTorch's default Linear init)."""
    keys = jax.random.split(key, 2 * (num_hidden + 2))

    def linear(kw, kb, fan_in, fan_out):
        bound = 1.0 / jnp.sqrt(fan_in)
        # stored already transposed: (fan_in, fan_out) so kernel does x @ W
        w = jax.random.uniform(kw, (fan_in, fan_out), jnp.float32, -bound, bound)
        b = jax.random.uniform(kb, (1, fan_out), jnp.float32, -bound, bound)
        return w, b

    w_in, b_in = linear(keys[0], keys[1], input_dim, hidden_dim)
    w_h_list, b_h_list = [], []
    for i in range(num_hidden):
        w, b = linear(keys[2 + 2 * i], keys[3 + 2 * i], hidden_dim, hidden_dim)
        w_h_list.append(w)
        b_h_list.append(b)
    w_h = jnp.stack(w_h_list, axis=0)          # (num_hidden, H, H)
    b_h = jnp.stack(b_h_list, axis=0)          # (num_hidden, 1, H)
    w_out, b_out = linear(keys[-2], keys[-1], hidden_dim, output_dim)
    return w_in, b_in, w_h, b_h, w_out, b_out


def reference_forward_bf16(x, w_in, b_in, w_h, b_h, w_out, b_out):
    """Reference with the same bf16-operand / f32-accumulation matmuls."""
    bf = jnp.bfloat16
    h = jnp.dot(x.astype(bf), w_in.astype(bf), preferred_element_type=jnp.float32)
    h = jnp.maximum(h + b_in, 0.0)
    for i in range(w_h.shape[0]):
        out = jnp.dot(h.astype(bf), w_h[i].astype(bf),
                      preferred_element_type=jnp.float32)
        h = jnp.maximum(out + b_h[i], 0.0) + h
    return jnp.dot(h.astype(bf), w_out.astype(bf),
                   preferred_element_type=jnp.float32) + b_out


def reference_forward_f32(x, w_in, b_in, w_h, b_h, w_out, b_out):
    h = jnp.maximum(x @ w_in + b_in, 0.0)
    for i in range(w_h.shape[0]):
        h = jnp.maximum(h @ w_h[i] + b_h[i], 0.0) + h
    return h @ w_out + b_out


if __name__ == "__main__":
    # Small shapes consistent with the module: batch=8, input_dim=6,
    # hidden_dim=32, output_dim=1, num_hidden=8.
    B, D_IN, H, D_OUT = 8, 6, 32, 1

    key = jax.random.PRNGKey(0)
    k_x, k_p = jax.random.split(key)
    x = jax.random.normal(k_x, (B, D_IN), dtype=jnp.float32)
    params = init_params(k_p, D_IN, H, D_OUT, NUM_HIDDEN)

    out = residual_net_forward(x, *params)
    out = jax.block_until_ready(out)

    ref_bf16 = reference_forward_bf16(x, *params)
    ref_f32 = reference_forward_f32(x, *params)

    assert out.shape == (B, D_OUT)
    # Tight check against the bf16-matched reference (block-diag packing only
    # adds exact zeros to the f32 accumulation, so numerics match closely).
    assert jnp.allclose(out, ref_bf16, atol=1e-3, rtol=1e-3), (out, ref_bf16)
    # Loose sanity check against full-f32 reference (bf16 matmul rounding).
    assert jnp.allclose(out, ref_f32, atol=5e-2, rtol=5e-2), (out, ref_f32)

    print("KERNEL_OK")
</pallas_src>

<mosaic_0001>
module attributes {stable_mosaic.version = 11 : i64} {
  func.func @kernel(%arg0: i32, %arg1: memref<32x24xf32, #tpu.memory_space<vmem>>, %arg2: memref<24x128xbf16, #tpu.memory_space<vmem>>, %arg3: memref<1x128xf32, #tpu.memory_space<vmem>>, %arg4: memref<8x128x128xbf16, #tpu.memory_space<vmem>>, %arg5: memref<8x1x128xf32, #tpu.memory_space<vmem>>, %arg6: memref<128x4xbf16, #tpu.memory_space<vmem>>, %arg7: memref<1x4xf32, #tpu.memory_space<vmem>>, %arg8: memref<32x4xf32, #tpu.memory_space<vmem>>) attributes {dimension_semantics = [#tpu.dimension_semantics<parallel>], iteration_bounds = array<i64: 1>, scalar_prefetch = 0 : i64, scratch_operands = 0 : i64, tpu.core_type = #tpu.core_type<tc>, window_params = [{transform_indices = @transform_0, window_bounds = array<i64: 32, 24>}, {pipeline_mode = #tpu.pipeline_mode<synchronous>, transform_indices = @transform_1, window_bounds = array<i64: 24, 128>}, {pipeline_mode = #tpu.pipeline_mode<synchronous>, transform_indices = @transform_2, window_bounds = array<i64: 1, 128>}, {pipeline_mode = #tpu.pipeline_mode<synchronous>, transform_indices = @transform_3, window_bounds = array<i64: 8, 128, 128>}, {pipeline_mode = #tpu.pipeline_mode<synchronous>, transform_indices = @transform_4, window_bounds = array<i64: 8, 1, 128>}, {pipeline_mode = #tpu.pipeline_mode<synchronous>, transform_indices = @transform_5, window_bounds = array<i64: 128, 4>}, {pipeline_mode = #tpu.pipeline_mode<synchronous>, transform_indices = @transform_6, window_bounds = array<i64: 1, 4>}, {transform_indices = @transform_7, window_bounds = array<i64: 32, 4>}]} {
    %c0 = arith.constant 0 : index
    %c0_0 = arith.constant 0 : index
    %0 = vector.load %arg2[%c0, %c0_0] : memref<24x128xbf16, #tpu.memory_space<vmem>>, vector<24x128xbf16>
    %c0_1 = arith.constant 0 : index
    %c0_2 = arith.constant 0 : index
    %1 = vector.load %arg3[%c0_1, %c0_2] : memref<1x128xf32, #tpu.memory_space<vmem>>, vector<1x128xf32>
    %c0_3 = arith.constant 0 : index
    %c0_4 = arith.constant 0 : index
    %2 = vector.load %arg1[%c0_3, %c0_4] : memref<32x24xf32, #tpu.memory_space<vmem>>, vector<16x24xf32>
    %3 = arith.truncf %2 : vector<16x24xf32> to vector<16x24xbf16>
    %cst = arith.constant dense<0.000000e+00> : vector<16x128xf32>
    %4 = tpu.matmul %3, %0, %cst {dimension_numbers = #tpu.dot_dimension_numbers<[1], [0], [0], [1], [0, 0, 1, 1], [], []>} : vector<16x24xbf16>, vector<24x128xbf16>, vector<16x128xf32> -> vector<16x128xf32>
    %5 = vector.broadcast %1 : vector<1x128xf32> to vector<16x128xf32>
    %6 = arith.addf %4, %5 : vector<16x128xf32>
    %cst_5 = arith.constant 0.000000e+00 : f32
    %7 = vector.broadcast %cst_5 : f32 to vector<16x128xf32>
    %8 = arith.maximumf %6, %7 : vector<16x128xf32>
    %c16 = arith.constant 16 : index
    %c0_6 = arith.constant 0 : index
    %9 = vector.load %arg1[%c16, %c0_6] : memref<32x24xf32, #tpu.memory_space<vmem>>, vector<16x24xf32>
    %10 = arith.truncf %9 : vector<16x24xf32> to vector<16x24xbf16>
    %cst_7 = arith.constant dense<0.000000e+00> : vector<16x128xf32>
    %11 = tpu.matmul %10, %0, %cst_7 {dimension_numbers = #tpu.dot_dimension_numbers<[1], [0], [0], [1], [0, 0, 1, 1], [], []>} : vector<16x24xbf16>, vector<24x128xbf16>, vector<16x128xf32> -> vector<16x128xf32>
    %12 = vector.broadcast %1 : vector<1x128xf32> to vector<16x128xf32>
    %13 = arith.addf %11, %12 : vector<16x128xf32>
    %cst_8 = arith.constant 0.000000e+00 : f32
    %14 = vector.broadcast %cst_8 : f32 to vector<16x128xf32>
    %15 = arith.maximumf %13, %14 : vector<16x128xf32>
    %c0_9 = arith.constant 0 : index
    %c0_10 = arith.constant 0 : index
    %c0_11 = arith.constant 0 : index
    %16 = vector.load %arg4[%c0_9, %c0_10, %c0_11] : memref<8x128x128xbf16, #tpu.memory_space<vmem>>, vector<1x128x128xbf16>
    %17 = vector.shape_cast %16 : vector<1x128x128xbf16> to vector<128x128xbf16>
    %c0_12 = arith.constant 0 : index
    %c0_13 = arith.constant 0 : index
    %c0_14 = arith.constant 0 : index
    %18 = vector.load %arg5[%c0_12, %c0_13, %c0_14] : memref<8x1x128xf32, #tpu.memory_space<vmem>>, vector<1x1x128xf32>
    %19 = vector.shape_cast %18 : vector<1x1x128xf32> to vector<1x128xf32>
    %20 = arith.truncf %8 : vector<16x128xf32> to vector<16x128xbf16>
    %cst_15 = arith.constant dense<0.000000e+00> : vector<16x128xf32>
    %21 = tpu.matmul %20, %17, %cst_15 {dimension_numbers = #tpu.dot_dimension_numbers<[1], [0], [0], [1], [0, 0, 1, 1], [], []>} : vector<16x128xbf16>, vector<128x128xbf16>, vector<16x128xf32> -> vector<16x128xf32>
    %22 = arith.truncf %15 : vector<16x128xf32> to vector<16x128xbf16>
    %cst_16 = arith.constant dense<0.000000e+00> : vector<16x128xf32>
    %23 = tpu.matmul %22, %17, %cst_16 {dimension_numbers = #tpu.dot_dimension_numbers<[1], [0], [0], [1], [0, 0, 1, 1], [], []>} : vector<16x128xbf16>, vector<128x128xbf16>, vector<16x128xf32> -> vector<16x128xf32>
    %24 = vector.broadcast %19 : vector<1x128xf32> to vector<16x128xf32>
    %25 = arith.addf %21, %24 : vector<16x128xf32>
    %cst_17 = arith.constant 0.000000e+00 : f32
    %26 = vector.broadcast %cst_17 : f32 to vector<16x128xf32>
    %27 = arith.maximumf %25, %26 : vector<16x128xf32>
    %28 = arith.addf %27, %8 : vector<16x128xf32>
    %29 = vector.broadcast %19 : vector<1x128xf32> to vector<16x128xf32>
    %30 = arith.addf %23, %29 : vector<16x128xf32>
    %cst_18 = arith.constant 0.000000e+00 : f32
    %31 = vector.broadcast %cst_18 : f32 to vector<16x128xf32>
    %32 = arith.maximumf %30, %31 : vector<16x128xf32>
    %33 = arith.addf %32, %15 : vector<16x128xf32>
    %c1 = arith.constant 1 : index
    %c0_19 = arith.constant 0 : index
    %c0_20 = arith.constant 0 : index
    %34 = vector.load %arg4[%c1, %c0_19, %c0_20] : memref<8x128x128xbf16, #tpu.memory_space<vmem>>, vector<1x128x128xbf16>
    %35 = vector.shape_cast %34 : vector<1x128x128xbf16> to vector<128x128xbf16>
    %c1_21 = arith.constant 1 : index
    %c0_22 = arith.constant 0 : index
    %c0_23 = arith.constant 0 : index
    %36 = vector.load %arg5[%c1_21, %c0_22, %c0_23] : memref<8x1x128xf32, #tpu.memory_space<vmem>>, vector<1x1x128xf32>
    %37 = vector.shape_cast %36 : vector<1x1x128xf32> to vector<1x128xf32>
    %38 = arith.truncf %28 : vector<16x128xf32> to vector<16x128xbf16>
    %cst_24 = arith.constant dense<0.000000e+00> : vector<16x128xf32>
    %39 = tpu.matmul %38, %35, %cst_24 {dimension_numbers = #tpu.dot_dimension_numbers<[1], [0], [0], [1], [0, 0, 1, 1], [], []>} : vector<16x128xbf16>, vector<128x128xbf16>, vector<16x128xf32> -> vector<16x128xf32>
    %40 = arith.truncf %33 : vector<16x128xf32> to vector<16x128xbf16>
    %cst_25 = arith.constant dense<0.000000e+00> : vector<16x128xf32>
    %41 = tpu.matmul %40, %35, %cst_25 {dimension_numbers = #tpu.dot_dimension_numbers<[1], [0], [0], [1], [0, 0, 1, 1], [], []>} : vector<16x128xbf16>, vector<128x128xbf16>, vector<16x128xf32> -> vector<16x128xf32>
    %42 = vector.broadcast %37 : vector<1x128xf32> to vector<16x128xf32>
    %43 = arith.addf %39, %42 : vector<16x128xf32>
    %cst_26 = arith.constant 0.000000e+00 : f32
    %44 = vector.broadcast %cst_26 : f32 to vector<16x128xf32>
    %45 = arith.maximumf %43, %44 : vector<16x128xf32>
    %46 = arith.addf %45, %28 : vector<16x128xf32>
    %47 = vector.broadcast %37 : vector<1x128xf32> to vector<16x128xf32>
    %48 = arith.addf %41, %47 : vector<16x128xf32>
    %cst_27 = arith.constant 0.000000e+00 : f32
    %49 = vector.broadcast %cst_27 : f32 to vector<16x128xf32>
    %50 = arith.maximumf %48, %49 : vector<16x128xf32>
    %51 = arith.addf %50, %33 : vector<16x128xf32>
    %c2 = arith.constant 2 : index
    %c0_28 = arith.constant 0 : index
    %c0_29 = arith.constant 0 : index
    %52 = vector.load %arg4[%c2, %c0_28, %c0_29] : memref<8x128x128xbf16, #tpu.memory_space<vmem>>, vector<1x128x128xbf16>
    %53 = vector.shape_cast %52 : vector<1x128x128xbf16> to vector<128x128xbf16>
    %c2_30 = arith.constant 2 : index
    %c0_31 = arith.constant 0 : index
    %c0_32 = arith.constant 0 : index
    %54 = vector.load %arg5[%c2_30, %c0_31, %c0_32] : memref<8x1x128xf32, #tpu.memory_space<vmem>>, vector<1x1x128xf32>
    %55 = vector.shape_cast %54 : vector<1x1x128xf32> to vector<1x128xf32>
    %56 = arith.truncf %46 : vector<16x128xf32> to vector<16x128xbf16>
    %cst_33 = arith.constant dense<0.000000e+00> : vector<16x128xf32>
    %57 = tpu.matmul %56, %53, %cst_33 {dimension_numbers = #tpu.dot_dimension_numbers<[1], [0], [0], [1], [0, 0, 1, 1], [], []>} : vector<16x128xbf16>, vector<128x128xbf16>, vector<16x128xf32> -> vector<16x128xf32>
    %58 = arith.truncf %51 : vector<16x128xf32> to vector<16x128xbf16>
    %cst_34 = arith.constant dense<0.000000e+00> : vector<16x128xf32>
    %59 = tpu.matmul %58, %53, %cst_34 {dimension_numbers = #tpu.dot_dimension_numbers<[1], [0], [0], [1], [0, 0, 1, 1], [], []>} : vector<16x128xbf16>, vector<128x128xbf16>, vector<16x128xf32> -> vector<16x128xf32>
    %60 = vector.broadcast %55 : vector<1x128xf32> to vector<16x128xf32>
    %61 = arith.addf %57, %60 : vector<16x128xf32>
    %cst_35 = arith.constant 0.000000e+00 : f32
    %62 = vector.broadcast %cst_35 : f32 to vector<16x128xf32>
    %63 = arith.maximumf %61, %62 : vector<16x128xf32>
    %64 = arith.addf %63, %46 : vector<16x128xf32>
    %65 = vector.broadcast %55 : vector<1x128xf32> to vector<16x128xf32>
    %66 = arith.addf %59, %65 : vector<16x128xf32>
    %cst_36 = arith.constant 0.000000e+00 : f32
    %67 = vector.broadcast %cst_36 : f32 to vector<16x128xf32>
    %68 = arith.maximumf %66, %67 : vector<16x128xf32>
    %69 = arith.addf %68, %51 : vector<16x128xf32>
    %c3 = arith.constant 3 : index
    %c0_37 = arith.constant 0 : index
    %c0_38 = arith.constant 0 : index
    %70 = vector.load %arg4[%c3, %c0_37, %c0_38] : memref<8x128x128xbf16, #tpu.memory_space<vmem>>, vector<1x128x128xbf16>
    %71 = vector.shape_cast %70 : vector<1x128x128xbf16> to vector<128x128xbf16>
    %c3_39 = arith.constant 3 : index
    %c0_40 = arith.constant 0 : index
    %c0_41 = arith.constant 0 : index
    %72 = vector.load %arg5[%c3_39, %c0_40, %c0_41] : memref<8x1x128xf32, #tpu.memory_space<vmem>>, vector<1x1x128xf32>
    %73 = vector.shape_cast %72 : vector<1x1x128xf32> to vector<1x128xf32>
    %74 = arith.truncf %64 : vector<16x128xf32> to vector<16x128xbf16>
    %cst_42 = arith.constant dense<0.000000e+00> : vector<16x128xf32>
    %75 = tpu.matmul %74, %71, %cst_42 {dimension_numbers = #tpu.dot_dimension_numbers<[1], [0], [0], [1], [0, 0, 1, 1], [], []>} : vector<16x128xbf16>, vector<128x128xbf16>, vector<16x128xf32> -> vector<16x128xf32>
    %76 = arith.truncf %69 : vector<16x128xf32> to vector<16x128xbf16>
    %cst_43 = arith.constant dense<0.000000e+00> : vector<16x128xf32>
    %77 = tpu.matmul %76, %71, %cst_43 {dimension_numbers = #tpu.dot_dimension_numbers<[1], [0], [0], [1], [0, 0, 1, 1], [], []>} : vector<16x128xbf16>, vector<128x128xbf16>, vector<16x128xf32> -> vector<16x128xf32>
    %78 = vector.broadcast %73 : vector<1x128xf32> to vector<16x128xf32>
    %79 = arith.addf %75, %78 : vector<16x128xf32>
    %cst_44 = arith.constant 0.000000e+00 : f32
    %80 = vector.broadcast %cst_44 : f32 to vector<16x128xf32>
    %81 = arith.maximumf %79, %80 : vector<16x128xf32>
    %82 = arith.addf %81, %64 : vector<16x128xf32>
    %83 = vector.broadcast %73 : vector<1x128xf32> to vector<16x128xf32>
    %84 = arith.addf %77, %83 : vector<16x128xf32>
    %cst_45 = arith.constant 0.000000e+00 : f32
    %85 = vector.broadcast %cst_45 : f32 to vector<16x128xf32>
    %86 = arith.maximumf %84, %85 : vector<16x128xf32>
    %87 = arith.addf %86, %69 : vector<16x128xf32>
    %c4 = arith.constant 4 : index
    %c0_46 = arith.constant 0 : index
    %c0_47 = arith.constant 0 : index
    %88 = vector.load %arg4[%c4, %c0_46, %c0_47] : memref<8x128x128xbf16, #tpu.memory_space<vmem>>, vector<1x128x128xbf16>
    %89 = vector.shape_cast %88 : vector<1x128x128xbf16> to vector<128x128xbf16>
    %c4_48 = arith.constant 4 : index
    %c0_49 = arith.constant 0 : index
    %c0_50 = arith.constant 0 : index
    %90 = vector.load %arg5[%c4_48, %c0_49, %c0_50] : memref<8x1x128xf32, #tpu.memory_space<vmem>>, vector<1x1x128xf32>
    %91 = vector.shape_cast %90 : vector<1x1x128xf32> to vector<1x128xf32>
    %92 = arith.truncf %82 : vector<16x128xf32> to vector<16x128xbf16>
    %cst_51 = arith.constant dense<0.000000e+00> : vector<16x128xf32>
    %93 = tpu.matmul %92, %89, %cst_51 {dimension_numbers = #tpu.dot_dimension_numbers<[1], [0], [0], [1], [0, 0, 1, 1], [], []>} : vector<16x128xbf16>, vector<128x128xbf16>, vector<16x128xf32> -> vector<16x128xf32>
    %94 = arith.truncf %87 : vector<16x128xf32> to vector<16x128xbf16>
    %cst_52 = arith.constant dense<0.000000e+00> : vector<16x128xf32>
    %95 = tpu.matmul %94, %89, %cst_52 {dimension_numbers = #tpu.dot_dimension_numbers<[1], [0], [0], [1], [0, 0, 1, 1], [], []>} : vector<16x128xbf16>, vector<128x128xbf16>, vector<16x128xf32> -> vector<16x128xf32>
    %96 = vector.broadcast %91 : vector<1x128xf32> to vector<16x128xf32>
    %97 = arith.addf %93, %96 : vector<16x128xf32>
    %cst_53 = arith.constant 0.000000e+00 : f32
    %98 = vector.broadcast %cst_53 : f32 to vector<16x128xf32>
    %99 = arith.maximumf %97, %98 : vector<16x128xf32>
    %100 = arith.addf %99, %82 : vector<16x128xf32>
    %101 = vector.broadcast %91 : vector<1x128xf32> to vector<16x128xf32>
    %102 = arith.addf %95, %101 : vector<16x128xf32>
    %cst_54 = arith.constant 0.000000e+00 : f32
    %103 = vector.broadcast %cst_54 : f32 to vector<16x128xf32>
    %104 = arith.maximumf %102, %103 : vector<16x128xf32>
    %105 = arith.addf %104, %87 : vector<16x128xf32>
    %c5 = arith.constant 5 : index
    %c0_55 = arith.constant 0 : index
    %c0_56 = arith.constant 0 : index
    %106 = vector.load %arg4[%c5, %c0_55, %c0_56] : memref<8x128x128xbf16, #tpu.memory_space<vmem>>, vector<1x128x128xbf16>
    %107 = vector.shape_cast %106 : vector<1x128x128xbf16> to vector<128x128xbf16>
    %c5_57 = arith.constant 5 : index
    %c0_58 = arith.constant 0 : index
    %c0_59 = arith.constant 0 : index
    %108 = vector.load %arg5[%c5_57, %c0_58, %c0_59] : memref<8x1x128xf32, #tpu.memory_space<vmem>>, vector<1x1x128xf32>
    %109 = vector.shape_cast %108 : vector<1x1x128xf32> to vector<1x128xf32>
    %110 = arith.truncf %100 : vector<16x128xf32> to vector<16x128xbf16>
    %cst_60 = arith.constant dense<0.000000e+00> : vector<16x128xf32>
    %111 = tpu.matmul %110, %107, %cst_60 {dimension_numbers = #tpu.dot_dimension_numbers<[1], [0], [0], [1], [0, 0, 1, 1], [], []>} : vector<16x128xbf16>, vector<128x128xbf16>, vector<16x128xf32> -> vector<16x128xf32>
    %112 = arith.truncf %105 : vector<16x128xf32> to vector<16x128xbf16>
    %cst_61 = arith.constant dense<0.000000e+00> : vector<16x128xf32>
    %113 = tpu.matmul %112, %107, %cst_61 {dimension_numbers = #tpu.dot_dimension_numbers<[1], [0], [0], [1], [0, 0, 1, 1], [], []>} : vector<16x128xbf16>, vector<128x128xbf16>, vector<16x128xf32> -> vector<16x128xf32>
    %114 = vector.broadcast %109 : vector<1x128xf32> to vector<16x128xf32>
    %115 = arith.addf %111, %114 : vector<16x128xf32>
    %cst_62 = arith.constant 0.000000e+00 : f32
    %116 = vector.broadcast %cst_62 : f32 to vector<16x128xf32>
    %117 = arith.maximumf %115, %116 : vector<16x128xf32>
    %118 = arith.addf %117, %100 : vector<16x128xf32>
    %119 = vector.broadcast %109 : vector<1x128xf32> to vector<16x128xf32>
    %120 = arith.addf %113, %119 : vector<16x128xf32>
    %cst_63 = arith.constant 0.000000e+00 : f32
    %121 = vector.broadcast %cst_63 : f32 to vector<16x128xf32>
    %122 = arith.maximumf %120, %121 : vector<16x128xf32>
    %123 = arith.addf %122, %105 : vector<16x128xf32>
    %c6 = arith.constant 6 : index
    %c0_64 = arith.constant 0 : index
    %c0_65 = arith.constant 0 : index
    %124 = vector.load %arg4[%c6, %c0_64, %c0_65] : memref<8x128x128xbf16, #tpu.memory_space<vmem>>, vector<1x128x128xbf16>
    %125 = vector.shape_cast %124 : vector<1x128x128xbf16> to vector<128x128xbf16>
    %c6_66 = arith.constant 6 : index
    %c0_67 = arith.constant 0 : index
    %c0_68 = arith.constant 0 : index
    %126 = vector.load %arg5[%c6_66, %c0_67, %c0_68] : memref<8x1x128xf32, #tpu.memory_space<vmem>>, vector<1x1x128xf32>
    %127 = vector.shape_cast %126 : vector<1x1x128xf32> to vector<1x128xf32>
    %128 = arith.truncf %118 : vector<16x128xf32> to vector<16x128xbf16>
    %cst_69 = arith.constant dense<0.000000e+00> : vector<16x128xf32>
    %129 = tpu.matmul %128, %125, %cst_69 {dimension_numbers = #tpu.dot_dimension_numbers<[1], [0], [0], [1], [0, 0, 1, 1], [], []>} : vector<16x128xbf16>, vector<128x128xbf16>, vector<16x128xf32> -> vector<16x128xf32>
    %130 = arith.truncf %123 : vector<16x128xf32> to vector<16x128xbf16>
    %cst_70 = arith.constant dense<0.000000e+00> : vector<16x128xf32>
    %131 = tpu.matmul %130, %125, %cst_70 {dimension_numbers = #tpu.dot_dimension_numbers<[1], [0], [0], [1], [0, 0, 1, 1], [], []>} : vector<16x128xbf16>, vector<128x128xbf16>, vector<16x128xf32> -> vector<16x128xf32>
    %132 = vector.broadcast %127 : vector<1x128xf32> to vector<16x128xf32>
    %133 = arith.addf %129, %132 : vector<16x128xf32>
    %cst_71 = arith.constant 0.000000e+00 : f32
    %134 = vector.broadcast %cst_71 : f32 to vector<16x128xf32>
    %135 = arith.maximumf %133, %134 : vector<16x128xf32>
    %136 = arith.addf %135, %118 : vector<16x128xf32>
    %137 = vector.broadcast %127 : vector<1x128xf32> to vector<16x128xf32>
    %138 = arith.addf %131, %137 : vector<16x128xf32>
    %cst_72 = arith.constant 0.000000e+00 : f32
    %139 = vector.broadcast %cst_72 : f32 to vector<16x128xf32>
    %140 = arith.maximumf %138, %139 : vector<16x128xf32>
    %141 = arith.addf %140, %123 : vector<16x128xf32>
    %c7 = arith.constant 7 : index
    %c0_73 = arith.constant 0 : index
    %c0_74 = arith.constant 0 : index
    %142 = vector.load %arg4[%c7, %c0_73, %c0_74] : memref<8x128x128xbf16, #tpu.memory_space<vmem>>, vector<1x128x128xbf16>
    %143 = vector.shape_cast %142 : vector<1x128x128xbf16> to vector<128x128xbf16>
    %c7_75 = arith.constant 7 : index
    %c0_76 = arith.constant 0 : index
    %c0_77 = arith.constant 0 : index
    %144 = vector.load %arg5[%c7_75, %c0_76, %c0_77] : memref<8x1x128xf32, #tpu.memory_space<vmem>>, vector<1x1x128xf32>
    %145 = vector.shape_cast %144 : vector<1x1x128xf32> to vector<1x128xf32>
    %146 = arith.truncf %136 : vector<16x128xf32> to vector<16x128xbf16>
    %cst_78 = arith.constant dense<0.000000e+00> : vector<16x128xf32>
    %147 = tpu.matmul %146, %143, %cst_78 {dimension_numbers = #tpu.dot_dimension_numbers<[1], [0], [0], [1], [0, 0, 1, 1], [], []>} : vector<16x128xbf16>, vector<128x128xbf16>, vector<16x128xf32> -> vector<16x128xf32>
    %148 = arith.truncf %141 : vector<16x128xf32> to vector<16x128xbf16>
    %cst_79 = arith.constant dense<0.000000e+00> : vector<16x128xf32>
    %149 = tpu.matmul %148, %143, %cst_79 {dimension_numbers = #tpu.dot_dimension_numbers<[1], [0], [0], [1], [0, 0, 1, 1], [], []>} : vector<16x128xbf16>, vector<128x128xbf16>, vector<16x128xf32> -> vector<16x128xf32>
    %150 = vector.broadcast %145 : vector<1x128xf32> to vector<16x128xf32>
    %151 = arith.addf %147, %150 : vector<16x128xf32>
    %cst_80 = arith.constant 0.000000e+00 : f32
    %152 = vector.broadcast %cst_80 : f32 to vector<16x128xf32>
    %153 = arith.maximumf %151, %152 : vector<16x128xf32>
    %154 = arith.addf %153, %136 : vector<16x128xf32>
    %155 = vector.broadcast %145 : vector<1x128xf32> to vector<16x128xf32>
    %156 = arith.addf %149, %155 : vector<16x128xf32>
    %cst_81 = arith.constant 0.000000e+00 : f32
    %157 = vector.broadcast %cst_81 : f32 to vector<16x128xf32>
    %158 = arith.maximumf %156, %157 : vector<16x128xf32>
    %159 = arith.addf %158, %141 : vector<16x128xf32>
    %c0_82 = arith.constant 0 : index
    %c0_83 = arith.constant 0 : index
    %160 = vector.load %arg6[%c0_82, %c0_83] : memref<128x4xbf16, #tpu.memory_space<vmem>>, vector<128x4xbf16>
    %c0_84 = arith.constant 0 : index
    %c0_85 = arith.constant 0 : index
    %161 = vector.load %arg7[%c0_84, %c0_85] : memref<1x4xf32, #tpu.memory_space<vmem>>, vector<1x4xf32>
    %162 = arith.truncf %154 : vector<16x128xf32> to vector<16x128xbf16>
    %cst_86 = arith.constant dense<0.000000e+00> : vector<16x4xf32>
    %163 = tpu.matmul %162, %160, %cst_86 {dimension_numbers = #tpu.dot_dimension_numbers<[1], [0], [0], [1], [0, 0, 1, 1], [], []>} : vector<16x128xbf16>, vector<128x4xbf16>, vector<16x4xf32> -> vector<16x4xf32>
    %164 = vector.broadcast %161 : vector<1x4xf32> to vector<16x4xf32>
    %165 = arith.addf %163, %164 : vector<16x4xf32>
    %c0_87 = arith.constant 0 : index
    %c0_88 = arith.constant 0 : index
    %166 = vector.load %arg8[%c0_87, %c0_88] : memref<32x4xf32, #tpu.memory_space<vmem>>, vector<16x4xf32>
    tpu.vector_store %arg8[%c0_87, %c0_88], %165 {strides = array<i32>} : memref<32x4xf32, #tpu.memory_space<vmem>>, vector<16x4xf32>,
    %167 = arith.truncf %159 : vector<16x128xf32> to vector<16x128xbf16>
    %cst_89 = arith.constant dense<0.000000e+00> : vector<16x4xf32>
    %168 = tpu.matmul %167, %160, %cst_89 {dimension_numbers = #tpu.dot_dimension_numbers<[1], [0], [0], [1], [0, 0, 1, 1], [], []>} : vector<16x128xbf16>, vector<128x4xbf16>, vector<16x4xf32> -> vector<16x4xf32>
    %169 = vector.broadcast %161 : vector<1x4xf32> to vector<16x4xf32>
    %170 = arith.addf %168, %169 : vector<16x4xf32>
    %c16_90 = arith.constant 16 : index
    %c0_91 = arith.constant 0 : index
    %171 = vector.load %arg8[%c16_90, %c0_91] : memref<32x4xf32, #tpu.memory_space<vmem>>, vector<16x4xf32>
    tpu.vector_store %arg8[%c16_90, %c0_91], %170 {strides = array<i32>} : memref<32x4xf32, #tpu.memory_space<vmem>>, vector<16x4xf32>,
    return
  }
  func.func @transform_0(%arg0: i32) -> (i32, i32) {
    %c0_i32 = arith.constant 0 : i32
    %c0_i32_0 = arith.constant 0 : i32
    return %arg0, %c0_i32 : i32, i32
  }
  func.func @transform_1(%arg0: i32) -> (i32, i32) {
    %c0_i32 = arith.constant 0 : i32
    %c0_i32_0 = arith.constant 0 : i32
    %c0_i32_1 = arith.constant 0 : i32
    return %c0_i32, %c0_i32_0 : i32, i32
  }
  func.func @transform_2(%arg0: i32) -> (i32, i32) {
    %c0_i32 = arith.constant 0 : i32
    %c0_i32_0 = arith.constant 0 : i32
    %c0_i32_1 = arith.constant 0 : i32
    return %c0_i32, %c0_i32_0 : i32, i32
  }
  func.func @transform_3(%arg0: i32) -> (i32, i32, i32) {
    %c0_i32 = arith.constant 0 : i32
    %c0_i32_0 = arith.constant 0 : i32
    %c0_i32_1 = arith.constant 0 : i32
    %c0_i32_2 = arith.constant 0 : i32
    return %c0_i32, %c0_i32_0, %c0_i32_1 : i32, i32, i32
  }
  func.func @transform_4(%arg0: i32) -> (i32, i32, i32) {
    %c0_i32 = arith.constant 0 : i32
    %c0_i32_0 = arith.constant 0 : i32
    %c0_i32_1 = arith.constant 0 : i32
    %c0_i32_2 = arith.constant 0 : i32
    return %c0_i32, %c0_i32_0, %c0_i32_1 : i32, i32, i32
  }
  func.func @transform_5(%arg0: i32) -> (i32, i32) {
    %c0_i32 = arith.constant 0 : i32
    %c0_i32_0 = arith.constant 0 : i32
    %c0_i32_1 = arith.constant 0 : i32
    return %c0_i32, %c0_i32_0 : i32, i32
  }
  func.func @transform_6(%arg0: i32) -> (i32, i32) {
    %c0_i32 = arith.constant 0 : i32
    %c0_i32_0 = arith.constant 0 : i32
    %c0_i32_1 = arith.constant 0 : i32
    return %c0_i32, %c0_i32_0 : i32, i32
  }
  func.func @transform_7(%arg0: i32) -> (i32, i32) {
    %c0_i32 = arith.constant 0 : i32
    %c0_i32_0 = arith.constant 0 : i32
    return %arg0, %c0_i32 : i32, i32
  }
}

</mosaic_0001>

<llo_original>
// kernel: tpu_custom_call.1
$region0: #{tpu_custom_call.1}
  #allocation0 [shape = 'u32[]', space=smem, size = 0x4, offset = 0x4, fixed_abs, tag = 'smem constant byte address 0x4 - core index']
  #allocation1 [shape = 'u32[72,128]{1,0:T(1,128)}', space=vmem, size = 0x9000, scoped, tag = 'internal scratch']
  %s0 = inlined_call_operand.vmem [shape: f32[32,24], index: 0, kind: input, shape index: {}]
  %s1 = inlined_call_operand.vmem [shape: bf16[24,128], index: 1, kind: input, shape index: {}]
  %s2 = inlined_call_operand.vmem [shape: f32[1,128], index: 2, kind: input, shape index: {}]
  %s3 = inlined_call_operand.hbm [shape: bf16[8,128,128], index: 3, kind: input, shape index: {}]
  %s4 = inlined_call_operand.vmem [shape: f32[8,1,128], index: 4, kind: input, shape index: {}]
  %s5 = inlined_call_operand.vmem [shape: bf16[128,4], index: 5, kind: input, shape index: {}]
  %s6 = inlined_call_operand.vmem [shape: f32[1,4], index: 6, kind: input, shape index: {}]
  %s7 = inlined_call_operand.vmem [shape: f32[32,4], index: 7, kind: output, shape index: {}]
  %s8 = sld [smem:[#allocation0]]
  $region42: #{tpu_custom_call.1} parent=0
    _
  %s10 = ssub.s32 1, %s8
  %s11 = scalar_select 0, %s10, %s8
  $region1: #{tpu_custom_call.1} parent=0
    #allocation2 [shape = 'u8[262144]{0}', space=vmem, size = 0x40000, scoped, tag = 'input window, operand 3, single buffered']
    #allocation3 [shape = 's32[1]{0}', space=sflag, size = 0x4, scoped, tag = 'scoped memory for tpu_custom_call.1']
    %12 = vsyncpa [#allocation3], 0
    // Predicated region
    $region2: #{tpu_custom_call.1} parent=1 // pred_check
      _
    $region3: #{tpu_custom_call.1} parent=1 // pred_check_branch
      %14 = sbr.rel (0) target = $region5
    $region4: #{tpu_custom_call.1} parent=1 // pred_region
      _
    $region5: #{tpu_custom_call.1} parent=1 // pred_fallthru
      _
    // Predicated region
    $region6: #{tpu_custom_call.1} parent=1 // pred_check
      _
    $region7: #{tpu_custom_call.1} parent=1 // pred_check_branch
      %16 = sbr.rel (0) target = $region9
    $region8: #{tpu_custom_call.1} parent=1 // pred_region
      _
    $region9: #{tpu_custom_call.1} parent=1 // pred_fallthru
      _
    // Predicated region
    $region10: #{tpu_custom_call.1} parent=1 // pred_check
      _
    $region11: #{tpu_custom_call.1} parent=1 // pred_check_branch
      %18 = sbr.rel (0) target = $region13
    $region12: #{tpu_custom_call.1} parent=1 // pred_region
      _
    $region13: #{tpu_custom_call.1} parent=1 // pred_fallthru
      _
    // Predicated region
    $region14: #{tpu_custom_call.1} parent=1 // pred_check
      _
    $region15: #{tpu_custom_call.1} parent=1 // pred_check_branch
      %20 = sbr.rel (0) target = $region17
    $region16: #{tpu_custom_call.1} parent=1 // pred_region
      %22 = vsyncadd [#allocation3], 0
      %s23 = sshll.u32 %s3, 4
      %s24 = int_to_ptr.hbm [resolvable:$true] %s23
      %s25 = sshll.u32 [#allocation2], 4
      %s26 = int_to_ptr.vmem [resolvable:$true] %s25
      %31 = dma.hbm_to_vmem [thread:$0]  %s24, 8192, %s26, [#allocation3], 64, 64, 4
    $region17: #{tpu_custom_call.1} parent=1 // pred_fallthru
      _
    // Predicated region
    $region18: #{tpu_custom_call.1} parent=1 // pred_check
      _
    $region19: #{tpu_custom_call.1} parent=1 // pred_check_branch
      %33 = sbr.rel (0) target = $region21
    $region20: #{tpu_custom_call.1} parent=1 // pred_region
      _
    $region21: #{tpu_custom_call.1} parent=1 // pred_fallthru
      _
    // Predicated region
    $region22: #{tpu_custom_call.1} parent=1 // pred_check
      _
    $region23: #{tpu_custom_call.1} parent=1 // pred_check_branch
      %35 = sbr.rel (0) target = $region25
    $region24: #{tpu_custom_call.1} parent=1 // pred_region
      _
    $region25: #{tpu_custom_call.1} parent=1 // pred_fallthru
      _
    // Predicated region
    $region26: #{tpu_custom_call.1} parent=1 // pred_check
      _
    $region27: #{tpu_custom_call.1} parent=1 // pred_check_branch
      %37 = sbr.rel (0) target = $region29
    $region28: #{tpu_custom_call.1} parent=1 // pred_region
      _
    $region29: #{tpu_custom_call.1} parent=1 // pred_fallthru
      _
    // Predicated region
    $region30: #{tpu_custom_call.1} parent=1 // pred_check
      _
    $region31: #{tpu_custom_call.1} parent=1 // pred_check_branch
      %39 = sbr.rel (0) target = $region33
    $region32: #{tpu_custom_call.1} parent=1 // pred_region
      %41 = dma.done [#allocation3], 8192
    $region33: #{tpu_custom_call.1} parent=1 // pred_fallthru
      _
    %v43 = vld [vmem:[%s1] sm:$0xf]
    %v44 = vld [vmem:[%s1 + $0x4] sm:$0xf]
    %v45 = vld [vmem:[%s1 + $0x8] sm:$0xf]
    %v46 = vld [vmem:[%s2] sm:$0x1]
    %v47 = vld [vmem:[%s0] sm:$0xff]
    %v48 = vld [vmem:[%s0 + $0x8] sm:$0xff]
    %v49 = vpack.c.bf16 %v48, %v47
    %v51 = vperm.slane %v46, 0
    %v56 = vunpack.c.l.b16 %v43
    %v57 = vunpack.c.l.b16 %v44
    %v58 = vunpack.c.l.b16 %v45
    %v59 = vpack.c.b16 %v57, %v56
    %v60 = vpack.c.b16 %v58, %v58
    %vm62 = vcmask 195584
    %v64 = vsel %vm62, %v49, 0
    %vm66 = vcmask 1043456
    %v68 = vsel %vm66, %v60, 0
    %70 = vmatpush.bf16.msra.mxu0 0
    %71 = vmatpush.bf16.msra.mxu0 0
    %72 = vmatpush.bf16.msra.mxu0 0
    %73 = vmatpush.bf16.msra.mxu0 0
    %74 = vmatpush.bf16.msra.mxu0 0
    %75 = vmatpush.bf16.msra.mxu0 0
    %76 = vmatpush.bf16.msra.mxu0 %v68
    %77 = vmatpush.bf16.msra.mxu0 %v59
    %78 = vmatmul.bf16.gmra.mxu0 %v64
    %v79 = vpop.f32.mrf.mxu0
    %v80 = vadd.f32 %v51, %v79
    %v81 = vpop.f32.mrf.mxu0
    %v82 = vadd.f32 %v51, %v81
    %83 = vdwg.mxu0
    %v84 = vmax.f32 %v80, 0.0
    %v85 = vmax.f32 %v82, 0.0
    %v86 = vld [vmem:[%s0 + $0x10] sm:$0xff]
    %v87 = vld [vmem:[%s0 + $0x18] sm:$0xff]
    %v88 = vpack.c.bf16 %v87, %v86
    %v90 = vsel %vm62, %v88, 0
    %92 = vmatpush.bf16.msra.mxu0 0
    %93 = vmatpush.bf16.msra.mxu0 0
    %94 = vmatpush.bf16.msra.mxu0 0
    %95 = vmatpush.bf16.msra.mxu0 0
    %96 = vmatpush.bf16.msra.mxu0 0
    %97 = vmatpush.bf16.msra.mxu0 0
    %98 = vmatpush.bf16.msra.mxu0 %v68
    %99 = vmatpush.bf16.msra.mxu0 %v59
    %100 = vmatmul.bf16.gmra.mxu0 %v90
    %v101 = vpop.f32.mrf.mxu0
    %v102 = vadd.f32 %v51, %v101
    %v103 = vpop.f32.mrf.mxu0
    %v104 = vadd.f32 %v51, %v103
    %105 = vdwg.mxu0
    %v106 = vmax.f32 %v102, 0.0
    %v107 = vmax.f32 %v104, 0.0
    %v108 = vld [vmem:[#allocation2] sm:$0xf]
    %v109 = vld [vmem:[#allocation2 + $0x4] sm:$0xf]
    %v110 = vld [vmem:[#allocation2 + $0x8] sm:$0xf]
    %v111 = vld [vmem:[#allocation2 + $0xc] sm:$0xf]
    %v112 = vld [vmem:[#allocation2 + $0x10] sm:$0xf]
    %v113 = vld [vmem:[#allocation2 + $0x14] sm:$0xf]
    %v114 = vld [vmem:[#allocation2 + $0x18] sm:$0xf]
    %v115 = vld [vmem:[#allocation2 + $0x1c] sm:$0xf]
    %v116 = vld [vmem:[#allocation2 + $0x20] sm:$0xf]
    %v117 = vld [vmem:[#allocation2 + $0x24] sm:$0xf]
    %v118 = vld [vmem:[#allocation2 + $0x28] sm:$0xf]
    %v119 = vld [vmem:[#allocation2 + $0x2c] sm:$0xf]
    %v120 = vld [vmem:[#allocation2 + $0x30] sm:$0xf]
    %v121 = vld [vmem:[#allocation2 + $0x34] sm:$0xf]
    %v122 = vld [vmem:[#allocation2 + $0x38] sm:$0xf]
    %v123 = vld [vmem:[#allocation2 + $0x3c] sm:$0xf]
    %v124 = vld [vmem:[%s4] sm:$0x1]
    %v125 = vpack.c.bf16 %v85, %v84
    %v126 = vpack.c.bf16 %v107, %v106
    %v128 = vperm.slane %v124, 0
    %v146 = vunpack.c.l.b16 %v108
    %v147 = vunpack.c.l.b16 %v109
    %v148 = vunpack.c.l.b16 %v110
    %v149 = vunpack.c.l.b16 %v111
    %v150 = vunpack.c.l.b16 %v112
    %v151 = vunpack.c.l.b16 %v113
    %v152 = vunpack.c.l.b16 %v114
    %v153 = vunpack.c.l.b16 %v115
    %v154 = vunpack.c.l.b16 %v116
    %v155 = vunpack.c.l.b16 %v117
    %v156 = vunpack.c.l.b16 %v118
    %v157 = vunpack.c.l.b16 %v119
    %v158 = vunpack.c.l.b16 %v120
    %v159 = vunpack.c.l.b16 %v121
    %v160 = vunpack.c.l.b16 %v122
    %v161 = vunpack.c.l.b16 %v123
    %v162 = vpack.c.b16 %v147, %v146
    %v163 = vpack.c.b16 %v149, %v148
    %v164 = vpack.c.b16 %v151, %v150
    %v165 = vpack.c.b16 %v153, %v152
    %v166 = vpack.c.b16 %v155, %v154
    %v167 = vpack.c.b16 %v157, %v156
    %v168 = vpack.c.b16 %v159, %v158
    %v169 = vpack.c.b16 %v161, %v160
    %178 = vmatpush.bf16.msra.mxu0 %v169
    %179 = vmatpush.bf16.msra.mxu0 %v168
    %180 = vmatpush.bf16.msra.mxu0 %v167
    %181 = vmatpush.bf16.msra.mxu0 %v166
    %182 = vmatpush.bf16.msra.mxu0 %v165
    %183 = vmatpush.bf16.msra.mxu0 %v164
    %184 = vmatpush.bf16.msra.mxu0 %v163
    %185 = vmatpush.bf16.msra.mxu0 %v162
    %186 = vmatmul.bf16.gmra.mxu0 %v125
    %v187 = vpop.f32.mrf.mxu0
    %v188 = vadd.f32 %v128, %v187
    %v189 = vpop.f32.mrf.mxu0
    %v190 = vadd.f32 %v128, %v189
    %191 = vdwg.mxu0
    %v192 = vmax.f32 %v188, 0.0
    %v193 = vmax.f32 %v190, 0.0
    %v194 = vadd.f32 %v192, %v84
    %v195 = vadd.f32 %v193, %v85
    %196 = vmatpush.bf16.msra.mxu0 %v169
    %197 = vmatpush.bf16.msra.mxu0 %v168
    %198 = vmatpush.bf16.msra.mxu0 %v167
    %199 = vmatpush.bf16.msra.mxu0 %v166
    %200 = vmatpush.bf16.msra.mxu0 %v165
    %201 = vmatpush.bf16.msra.mxu0 %v164
    %202 = vmatpush.bf16.msra.mxu0 %v163
    %203 = vmatpush.bf16.msra.mxu0 %v162
    %204 = vmatmul.bf16.gmra.mxu0 %v126
    %v205 = vpop.f32.mrf.mxu0
    %v206 = vadd.f32 %v128, %v205
    %v207 = vpop.f32.mrf.mxu0
    %v208 = vadd.f32 %v128, %v207
    %209 = vdwg.mxu0
    %v210 = vmax.f32 %v206, 0.0
    %v211 = vmax.f32 %v208, 0.0
    %v212 = vadd.f32 %v210, %v106
    %v213 = vadd.f32 %v211, %v107
    %s214 = scalar_lea.vmem [#allocation2], 64
    %v215 = vld [vmem:[%s214] sm:$0xf]
    %v216 = vld [vmem:[%s214 + $0x4] sm:$0xf]
    %v217 = vld [vmem:[%s214 + $0x8] sm:$0xf]
    %v218 = vld [vmem:[%s214 + $0xc] sm:$0xf]
    %v219 = vld [vmem:[%s214 + $0x10] sm:$0xf]
    %v220 = vld [vmem:[%s214 + $0x14] sm:$0xf]
    %v221 = vld [vmem:[%s214 + $0x18] sm:$0xf]
    %v222 = vld [vmem:[%s214 + $0x1c] sm:$0xf]
    %v223 = vld [vmem:[%s214 + $0x20] sm:$0xf]
    %v224 = vld [vmem:[%s214 + $0x24] sm:$0xf]
    %v225 = vld [vmem:[%s214 + $0x28] sm:$0xf]
    %v226 = vld [vmem:[%s214 + $0x2c] sm:$0xf]
    %v227 = vld [vmem:[%s214 + $0x30] sm:$0xf]
    %v228 = vld [vmem:[%s214 + $0x34] sm:$0xf]
    %v229 = vld [vmem:[%s214 + $0x38] sm:$0xf]
    %v230 = vld [vmem:[%s214 + $0x3c] sm:$0xf]
    %s231 = scalar_lea.vmem %s4, 1
    %v232 = vld [vmem:[%s231] sm:$0x1]
    %v233 = vpack.c.bf16 %v195, %v194
    %v234 = vpack.c.bf16 %v213, %v212
    %v236 = vperm.slane %v232, 0
    %v254 = vunpack.c.l.b16 %v215
    %v255 = vunpack.c.l.b16 %v216
    %v256 = vunpack.c.l.b16 %v217
    %v257 = vunpack.c.l.b16 %v218
    %v258 = vunpack.c.l.b16 %v219
    %v259 = vunpack.c.l.b16 %v220
    %v260 = vunpack.c.l.b16 %v221
    %v261 = vunpack.c.l.b16 %v222
    %v262 = vunpack.c.l.b16 %v223
    %v263 = vunpack.c.l.b16 %v224
    %v264 = vunpack.c.l.b16 %v225
    %v265 = vunpack.c.l.b16 %v226
    %v266 = vunpack.c.l.b16 %v227
    %v267 = vunpack.c.l.b16 %v228
    %v268 = vunpack.c.l.b16 %v229
    %v269 = vunpack.c.l.b16 %v230
    %v270 = vpack.c.b16 %v255, %v254
    %v271 = vpack.c.b16 %v257, %v256
    %v272 = vpack.c.b16 %v259, %v258
    %v273 = vpack.c.b16 %v261, %v260
    %v274 = vpack.c.b16 %v263, %v262
    %v275 = vpack.c.b16 %v265, %v264
    %v276 = vpack.c.b16 %v267, %v266
    %v277 = vpack.c.b16 %v269, %v268
    %286 = vmatpush.bf16.msra.mxu0 %v277
    %287 = vmatpush.bf16.msra.mxu0 %v276
    %288 = vmatpush.bf16.msra.mxu0 %v275
    %289 = vmatpush.bf16.msra.mxu0 %v274
    %290 = vmatpush.bf16.msra.mxu0 %v273
    %291 = vmatpush.bf16.msra.mxu0 %v272
    %292 = vmatpush.bf16.msra.mxu0 %v271
    %293 = vmatpush.bf16.msra.mxu0 %v270
    %294 = vmatmul.bf16.gmra.mxu0 %v233
    %v295 = vpop.f32.mrf.mxu0
    %v296 = vadd.f32 %v236, %v295
    %v297 = vpop.f32.mrf.mxu0
    %v298 = vadd.f32 %v236, %v297
    %299 = vdwg.mxu0
    %v300 = vmax.f32 %v296, 0.0
    %v301 = vmax.f32 %v298, 0.0
    %v302 = vadd.f32 %v300, %v194
    %v303 = vadd.f32 %v301, %v195
    %304 = vmatpush.bf16.msra.mxu0 %v277
    %305 = vmatpush.bf16.msra.mxu0 %v276
    %306 = vmatpush.bf16.msra.mxu0 %v275
    %307 = vmatpush.bf16.msra.mxu0 %v274
    %308 = vmatpush.bf16.msra.mxu0 %v273
    %309 = vmatpush.bf16.msra.mxu0 %v272
    %310 = vmatpush.bf16.msra.mxu0 %v271
    %311 = vmatpush.bf16.msra.mxu0 %v270
    %312 = vmatmul.bf16.gmra.mxu0 %v234
    %v313 = vpop.f32.mrf.mxu0
    %v314 = vadd.f32 %v236, %v313
    %v315 = vpop.f32.mrf.mxu0
    %v316 = vadd.f32 %v236, %v315
    %317 = vdwg.mxu0
    %v318 = vmax.f32 %v314, 0.0
    %v319 = vmax.f32 %v316, 0.0
    %v320 = vadd.f32 %v318, %v212
    %v321 = vadd.f32 %v319, %v213
    %s322 = scalar_lea.vmem [#allocation2], 128
    %v323 = vld [vmem:[%s322] sm:$0xf]
    %v324 = vld [vmem:[%s322 + $0x4] sm:$0xf]
    %v325 = vld [vmem:[%s322 + $0x8] sm:$0xf]
    %v326 = vld [vmem:[%s322 + $0xc] sm:$0xf]
    %v327 = vld [vmem:[%s322 + $0x10] sm:$0xf]
    %v328 = vld [vmem:[%s322 + $0x14] sm:$0xf]
    %v329 = vld [vmem:[%s322 + $0x18] sm:$0xf]
    %v330 = vld [vmem:[%s322 + $0x1c] sm:$0xf]
    %v331 = vld [vmem:[%s322 + $0x20] sm:$0xf]
    %v332 = vld [vmem:[%s322 + $0x24] sm:$0xf]
    %v333 = vld [vmem:[%s322 + $0x28] sm:$0xf]
    %v334 = vld [vmem:[%s322 + $0x2c] sm:$0xf]
    %v335 = vld [vmem:[%s322 + $0x30] sm:$0xf]
    %v336 = vld [vmem:[%s322 + $0x34] sm:$0xf]
    %v337 = vld [vmem:[%s322 + $0x38] sm:$0xf]
    %v338 = vld [vmem:[%s322 + $0x3c] sm:$0xf]
    %s339 = scalar_lea.vmem %s4, 2
    %v340 = vld [vmem:[%s339] sm:$0x1]
    %v341 = vpack.c.bf16 %v303, %v302
    %v342 = vpack.c.bf16 %v321, %v320
    %v344 = vperm.slane %v340, 0
    %v362 = vunpack.c.l.b16 %v323
    %v363 = vunpack.c.l.b16 %v324
    %v364 = vunpack.c.l.b16 %v325
    %v365 = vunpack.c.l.b16 %v326
    %v366 = vunpack.c.l.b16 %v327
    %v367 = vunpack.c.l.b16 %v328
    %v368 = vunpack.c.l.b16 %v329
    %v369 = vunpack.c.l.b16 %v330
    %v370 = vunpack.c.l.b16 %v331
    %v371 = vunpack.c.l.b16 %v332
    %v372 = vunpack.c.l.b16 %v333
    %v373 = vunpack.c.l.b16 %v334
    %v374 = vunpack.c.l.b16 %v335
    %v375 = vunpack.c.l.b16 %v336
    %v376 = vunpack.c.l.b16 %v337
    %v377 = vunpack.c.l.b16 %v338
    %v378 = vpack.c.b16 %v363, %v362
    %v379 = vpack.c.b16 %v365, %v364
    %v380 = vpack.c.b16 %v367, %v366
    %v381 = vpack.c.b16 %v369, %v368
    %v382 = vpack.c.b16 %v371, %v370
    %v383 = vpack.c.b16 %v373, %v372
    %v384 = vpack.c.b16 %v375, %v374
    %v385 = vpack.c.b16 %v377, %v376
    %394 = vmatpush.bf16.msra.mxu0 %v385
    %395 = vmatpush.bf16.msra.mxu0 %v384
    %396 = vmatpush.bf16.msra.mxu0 %v383
    %397 = vmatpush.bf16.msra.mxu0 %v382
    %398 = vmatpush.bf16.msra.mxu0 %v381
    %399 = vmatpush.bf16.msra.mxu0 %v380
    %400 = vmatpush.bf16.msra.mxu0 %v379
    %401 = vmatpush.bf16.msra.mxu0 %v378
    %402 = vmatmul.bf16.gmra.mxu0 %v341
    %v403 = vpop.f32.mrf.mxu0
    %v404 = vadd.f32 %v344, %v403
    %v405 = vpop.f32.mrf.mxu0
    %v406 = vadd.f32 %v344, %v405
    %407 = vdwg.mxu0
    %v408 = vmax.f32 %v404, 0.0
    %v409 = vmax.f32 %v406, 0.0
    %v410 = vadd.f32 %v408, %v302
    %v411 = vadd.f32 %v409, %v303
    %412 = vmatpush.bf16.msra.mxu0 %v385
    %413 = vmatpush.bf16.msra.mxu0 %v384
    %414 = vmatpush.bf16.msra.mxu0 %v383
    %415 = vmatpush.bf16.msra.mxu0 %v382
    %416 = vmatpush.bf16.msra.mxu0 %v381
    %417 = vmatpush.bf16.msra.mxu0 %v380
    %418 = vmatpush.bf16.msra.mxu0 %v379
    %419 = vmatpush.bf16.msra.mxu0 %v378
    %420 = vmatmul.bf16.gmra.mxu0 %v342
    %v421 = vpop.f32.mrf.mxu0
    %v422 = vadd.f32 %v344, %v421
    %v423 = vpop.f32.mrf.mxu0
    %v424 = vadd.f32 %v344, %v423
    %425 = vdwg.mxu0
    %v426 = vmax.f32 %v422, 0.0
    %v427 = vmax.f32 %v424, 0.0
    %v428 = vadd.f32 %v426, %v320
    %v429 = vadd.f32 %v427, %v321
    %s430 = scalar_lea.vmem [#allocation2], 192
    %v431 = vld [vmem:[%s430] sm:$0xf]
    %v432 = vld [vmem:[%s430 + $0x4] sm:$0xf]
    %v433 = vld [vmem:[%s430 + $0x8] sm:$0xf]
    %v434 = vld [vmem:[%s430 + $0xc] sm:$0xf]
    %v435 = vld [vmem:[%s430 + $0x10] sm:$0xf]
    %v436 = vld [vmem:[%s430 + $0x14] sm:$0xf]
    %v437 = vld [vmem:[%s430 + $0x18] sm:$0xf]
    %v438 = vld [vmem:[%s430 + $0x1c] sm:$0xf]
    %v439 = vld [vmem:[%s430 + $0x20] sm:$0xf]
    %v440 = vld [vmem:[%s430 + $0x24] sm:$0xf]
    %v441 = vld [vmem:[%s430 + $0x28] sm:$0xf]
    %v442 = vld [vmem:[%s430 + $0x2c] sm:$0xf]
    %v443 = vld [vmem:[%s430 + $0x30] sm:$0xf]
    %v444 = vld [vmem:[%s430 + $0x34] sm:$0xf]
    %v445 = vld [vmem:[%s430 + $0x38] sm:$0xf]
    %v446 = vld [vmem:[%s430 + $0x3c] sm:$0xf]
    %s447 = scalar_lea.vmem %s4, 3
    %v448 = vld [vmem:[%s447] sm:$0x1]
    %v449 = vpack.c.bf16 %v411, %v410
    %v450 = vpack.c.bf16 %v429, %v428
    %v452 = vperm.slane %v448, 0
    %v470 = vunpack.c.l.b16 %v431
    %v471 = vunpack.c.l.b16 %v432
    %v472 = vunpack.c.l.b16 %v433
    %v473 = vunpack.c.l.b16 %v434
    %v474 = vunpack.c.l.b16 %v435
    %v475 = vunpack.c.l.b16 %v436
    %v476 = vunpack.c.l.b16 %v437
    %v477 = vunpack.c.l.b16 %v438
    %v478 = vunpack.c.l.b16 %v439
    %v479 = vunpack.c.l.b16 %v440
    %v480 = vunpack.c.l.b16 %v441
    %v481 = vunpack.c.l.b16 %v442
    %v482 = vunpack.c.l.b16 %v443
    %v483 = vunpack.c.l.b16 %v444
    %v484 = vunpack.c.l.b16 %v445
    %v485 = vunpack.c.l.b16 %v446
    %v486 = vpack.c.b16 %v471, %v470
    %v487 = vpack.c.b16 %v473, %v472
    %v488 = vpack.c.b16 %v475, %v474
    %v489 = vpack.c.b16 %v477, %v476
    %v490 = vpack.c.b16 %v479, %v478
    %v491 = vpack.c.b16 %v481, %v480
    %v492 = vpack.c.b16 %v483, %v482
    %v493 = vpack.c.b16 %v485, %v484
    %502 = vmatpush.bf16.msra.mxu0 %v493
    %503 = vmatpush.bf16.msra.mxu0 %v492
    %504 = vmatpush.bf16.msra.mxu0 %v491
    %505 = vmatpush.bf16.msra.mxu0 %v490
    %506 = vmatpush.bf16.msra.mxu0 %v489
    %507 = vmatpush.bf16.msra.mxu0 %v488
    %508 = vmatpush.bf16.msra.mxu0 %v487
    %509 = vmatpush.bf16.msra.mxu0 %v486
    %510 = vmatmul.bf16.gmra.mxu0 %v449
    %v511 = vpop.f32.mrf.mxu0
    %v512 = vadd.f32 %v452, %v511
    %v513 = vpop.f32.mrf.mxu0
    %v514 = vadd.f32 %v452, %v513
    %515 = vdwg.mxu0
    %v516 = vmax.f32 %v512, 0.0
    %v517 = vmax.f32 %v514, 0.0
    %v518 = vadd.f32 %v516, %v410
    %v519 = vadd.f32 %v517, %v411
    %520 = vmatpush.bf16.msra.mxu0 %v493
    %521 = vmatpush.bf16.msra.mxu0 %v492
    %522 = vmatpush.bf16.msra.mxu0 %v491
    %523 = vmatpush.bf16.msra.mxu0 %v490
    %524 = vmatpush.bf16.msra.mxu0 %v489
    %525 = vmatpush.bf16.msra.mxu0 %v488
    %526 = vmatpush.bf16.msra.mxu0 %v487
    %527 = vmatpush.bf16.msra.mxu0 %v486
    %528 = vmatmul.bf16.gmra.mxu0 %v450
    %v529 = vpop.f32.mrf.mxu0
    %v530 = vadd.f32 %v452, %v529
    %v531 = vpop.f32.mrf.mxu0
    %v532 = vadd.f32 %v452, %v531
    %533 = vdwg.mxu0
    %v534 = vmax.f32 %v530, 0.0
    %v535 = vmax.f32 %v532, 0.0
    %v536 = vadd.f32 %v534, %v428
    %v537 = vadd.f32 %v535, %v429
    %s538 = scalar_lea.vmem [#allocation2], 256
    %v539 = vld [vmem:[%s538] sm:$0xf]
    %v540 = vld [vmem:[%s538 + $0x4] sm:$0xf]
    %v541 = vld [vmem:[%s538 + $0x8] sm:$0xf]
    %v542 = vld [vmem:[%s538 + $0xc] sm:$0xf]
    %v543 = vld [vmem:[%s538 + $0x10] sm:$0xf]
    %v544 = vld [vmem:[%s538 + $0x14] sm:$0xf]
    %v545 = vld [vmem:[%s538 + $0x18] sm:$0xf]
    %v546 = vld [vmem:[%s538 + $0x1c] sm:$0xf]
    %v547 = vld [vmem:[%s538 + $0x20] sm:$0xf]
    %v548 = vld [vmem:[%s538 + $0x24] sm:$0xf]
    %v549 = vld [vmem:[%s538 + $0x28] sm:$0xf]
    %v550 = vld [vmem:[%s538 + $0x2c] sm:$0xf]
    %v551 = vld [vmem:[%s538 + $0x30] sm:$0xf]
    %v552 = vld [vmem:[%s538 + $0x34] sm:$0xf]
    %v553 = vld [vmem:[%s538 + $0x38] sm:$0xf]
    %v554 = vld [vmem:[%s538 + $0x3c] sm:$0xf]
    %s555 = scalar_lea.vmem %s4, 4
    %v556 = vld [vmem:[%s555] sm:$0x1]
    %v557 = vpack.c.bf16 %v519, %v518
    %v558 = vpack.c.bf16 %v537, %v536
    %v560 = vperm.slane %v556, 0
    %v578 = vunpack.c.l.b16 %v539
    %v579 = vunpack.c.l.b16 %v540
    %v580 = vunpack.c.l.b16 %v541
    %v581 = vunpack.c.l.b16 %v542
    %v582 = vunpack.c.l.b16 %v543
    %v583 = vunpack.c.l.b16 %v544
    %v584 = vunpack.c.l.b16 %v545
    %v585 = vunpack.c.l.b16 %v546
    %v586 = vunpack.c.l.b16 %v547
    %v587 = vunpack.c.l.b16 %v548
    %v588 = vunpack.c.l.b16 %v549
    %v589 = vunpack.c.l.b16 %v550
    %v590 = vunpack.c.l.b16 %v551
    %v591 = vunpack.c.l.b16 %v552
    %v592 = vunpack.c.l.b16 %v553
    %v593 = vunpack.c.l.b16 %v554
    %v594 = vpack.c.b16 %v579, %v578
    %v595 = vpack.c.b16 %v581, %v580
    %v596 = vpack.c.b16 %v583, %v582
    %v597 = vpack.c.b16 %v585, %v584
    %v598 = vpack.c.b16 %v587, %v586
    %v599 = vpack.c.b16 %v589, %v588
    %v600 = vpack.c.b16 %v591, %v590
    %v601 = vpack.c.b16 %v593, %v592
    %610 = vmatpush.bf16.msra.mxu0 %v601
    %611 = vmatpush.bf16.msra.mxu0 %v600
    %612 = vmatpush.bf16.msra.mxu0 %v599
    %613 = vmatpush.bf16.msra.mxu0 %v598
    %614 = vmatpush.bf16.msra.mxu0 %v597
    %615 = vmatpush.bf16.msra.mxu0 %v596
    %616 = vmatpush.bf16.msra.mxu0 %v595
    %617 = vmatpush.bf16.msra.mxu0 %v594
    %618 = vmatmul.bf16.gmra.mxu0 %v557
    %v619 = vpop.f32.mrf.mxu0
    %v620 = vadd.f32 %v560, %v619
    %v621 = vpop.f32.mrf.mxu0
    %v622 = vadd.f32 %v560, %v621
    %623 = vdwg.mxu0
    %v624 = vmax.f32 %v620, 0.0
    %v625 = vmax.f32 %v622, 0.0
    %v626 = vadd.f32 %v624, %v518
    %v627 = vadd.f32 %v625, %v519
    %628 = vmatpush.bf16.msra.mxu0 %v601
    %629 = vmatpush.bf16.msra.mxu0 %v600
    %630 = vmatpush.bf16.msra.mxu0 %v599
    %631 = vmatpush.bf16.msra.mxu0 %v598
    %632 = vmatpush.bf16.msra.mxu0 %v597
    %633 = vmatpush.bf16.msra.mxu0 %v596
    %634 = vmatpush.bf16.msra.mxu0 %v595
    %635 = vmatpush.bf16.msra.mxu0 %v594
    %636 = vmatmul.bf16.gmra.mxu0 %v558
    %v637 = vpop.f32.mrf.mxu0
    %v638 = vadd.f32 %v560, %v637
    %v639 = vpop.f32.mrf.mxu0
    %v640 = vadd.f32 %v560, %v639
    %641 = vdwg.mxu0
    %v642 = vmax.f32 %v638, 0.0
    %v643 = vmax.f32 %v640, 0.0
    %v644 = vadd.f32 %v642, %v536
    %v645 = vadd.f32 %v643, %v537
    %s646 = scalar_lea.vmem [#allocation2], 320
    %v647 = vld [vmem:[%s646] sm:$0xf]
    %v648 = vld [vmem:[%s646 + $0x4] sm:$0xf]
    %v649 = vld [vmem:[%s646 + $0x8] sm:$0xf]
    %v650 = vld [vmem:[%s646 + $0xc] sm:$0xf]
    %v651 = vld [vmem:[%s646 + $0x10] sm:$0xf]
    %v652 = vld [vmem:[%s646 + $0x14] sm:$0xf]
    %v653 = vld [vmem:[%s646 + $0x18] sm:$0xf]
    %v654 = vld [vmem:[%s646 + $0x1c] sm:$0xf]
    %v655 = vld [vmem:[%s646 + $0x20] sm:$0xf]
    %v656 = vld [vmem:[%s646 + $0x24] sm:$0xf]
    %v657 = vld [vmem:[%s646 + $0x28] sm:$0xf]
    %v658 = vld [vmem:[%s646 + $0x2c] sm:$0xf]
    %v659 = vld [vmem:[%s646 + $0x30] sm:$0xf]
    %v660 = vld [vmem:[%s646 + $0x34] sm:$0xf]
    %v661 = vld [vmem:[%s646 + $0x38] sm:$0xf]
    %v662 = vld [vmem:[%s646 + $0x3c] sm:$0xf]
    %s663 = scalar_lea.vmem %s4, 5
    %v664 = vld [vmem:[%s663] sm:$0x1]
    %v665 = vpack.c.bf16 %v627, %v626
    %v666 = vpack.c.bf16 %v645, %v644
    %v668 = vperm.slane %v664, 0
    %v686 = vunpack.c.l.b16 %v647
    %v687 = vunpack.c.l.b16 %v648
    %v688 = vunpack.c.l.b16 %v649
    %v689 = vunpack.c.l.b16 %v650
    %v690 = vunpack.c.l.b16 %v651
    %v691 = vunpack.c.l.b16 %v652
    %v692 = vunpack.c.l.b16 %v653
    %v693 = vunpack.c.l.b16 %v654
    %v694 = vunpack.c.l.b16 %v655
    %v695 = vunpack.c.l.b16 %v656
    %v696 = vunpack.c.l.b16 %v657
    %v697 = vunpack.c.l.b16 %v658
    %v698 = vunpack.c.l.b16 %v659
    %v699 = vunpack.c.l.b16 %v660
    %v700 = vunpack.c.l.b16 %v661
    %v701 = vunpack.c.l.b16 %v662
    %v702 = vpack.c.b16 %v687, %v686
    %v703 = vpack.c.b16 %v689, %v688
    %v704 = vpack.c.b16 %v691, %v690
    %v705 = vpack.c.b16 %v693, %v692
    %v706 = vpack.c.b16 %v695, %v694
    %v707 = vpack.c.b16 %v697, %v696
    %v708 = vpack.c.b16 %v699, %v698
    %v709 = vpack.c.b16 %v701, %v700
    %718 = vmatpush.bf16.msra.mxu0 %v709
    %719 = vmatpush.bf16.msra.mxu0 %v708
    %720 = vmatpush.bf16.msra.mxu0 %v707
    %721 = vmatpush.bf16.msra.mxu0 %v706
    %722 = vmatpush.bf16.msra.mxu0 %v705
    %723 = vmatpush.bf16.msra.mxu0 %v704
    %724 = vmatpush.bf16.msra.mxu0 %v703
    %725 = vmatpush.bf16.msra.mxu0 %v702
    %726 = vmatmul.bf16.gmra.mxu0 %v665
    %v727 = vpop.f32.mrf.mxu0
    %v728 = vadd.f32 %v668, %v727
    %v729 = vpop.f32.mrf.mxu0
    %v730 = vadd.f32 %v668, %v729
    %731 = vdwg.mxu0
    %v732 = vmax.f32 %v728, 0.0
    %v733 = vmax.f32 %v730, 0.0
    %v734 = vadd.f32 %v732, %v626
    %v735 = vadd.f32 %v733, %v627
    %736 = vmatpush.bf16.msra.mxu0 %v709
    %737 = vmatpush.bf16.msra.mxu0 %v708
    %738 = vmatpush.bf16.msra.mxu0 %v707
    %739 = vmatpush.bf16.msra.mxu0 %v706
    %740 = vmatpush.bf16.msra.mxu0 %v705
    %741 = vmatpush.bf16.msra.mxu0 %v704
    %742 = vmatpush.bf16.msra.mxu0 %v703
    %743 = vmatpush.bf16.msra.mxu0 %v702
    %744 = vmatmul.bf16.gmra.mxu0 %v666
    %v745 = vpop.f32.mrf.mxu0
    %v746 = vadd.f32 %v668, %v745
    %v747 = vpop.f32.mrf.mxu0
    %v748 = vadd.f32 %v668, %v747
    %749 = vdwg.mxu0
    %v750 = vmax.f32 %v746, 0.0
    %v751 = vmax.f32 %v748, 0.0
    %v752 = vadd.f32 %v750, %v644
    %v753 = vadd.f32 %v751, %v645
    %s754 = scalar_lea.vmem [#allocation2], 384
    %v755 = vld [vmem:[%s754] sm:$0xf]
    %v756 = vld [vmem:[%s754 + $0x4] sm:$0xf]
    %v757 = vld [vmem:[%s754 + $0x8] sm:$0xf]
    %v758 = vld [vmem:[%s754 + $0xc] sm:$0xf]
    %v759 = vld [vmem:[%s754 + $0x10] sm:$0xf]
    %v760 = vld [vmem:[%s754 + $0x14] sm:$0xf]
    %v761 = vld [vmem:[%s754 + $0x18] sm:$0xf]
    %v762 = vld [vmem:[%s754 + $0x1c] sm:$0xf]
    %v763 = vld [vmem:[%s754 + $0x20] sm:$0xf]
    %v764 = vld [vmem:[%s754 + $0x24] sm:$0xf]
    %v765 = vld [vmem:[%s754 + $0x28] sm:$0xf]
    %v766 = vld [vmem:[%s754 + $0x2c] sm:$0xf]
    %v767 = vld [vmem:[%s754 + $0x30] sm:$0xf]
    %v768 = vld [vmem:[%s754 + $0x34] sm:$0xf]
    %v769 = vld [vmem:[%s754 + $0x38] sm:$0xf]
    %v770 = vld [vmem:[%s754 + $0x3c] sm:$0xf]
    %s771 = scalar_lea.vmem %s4, 6
    %v772 = vld [vmem:[%s771] sm:$0x1]
    %v773 = vpack.c.bf16 %v735, %v734
    %v774 = vpack.c.bf16 %v753, %v752
    %v776 = vperm.slane %v772, 0
    %v794 = vunpack.c.l.b16 %v755
    %v795 = vunpack.c.l.b16 %v756
    %v796 = vunpack.c.l.b16 %v757
    %v797 = vunpack.c.l.b16 %v758
    %v798 = vunpack.c.l.b16 %v759
    %v799 = vunpack.c.l.b16 %v760
    %v800 = vunpack.c.l.b16 %v761
    %v801 = vunpack.c.l.b16 %v762
    %v802 = vunpack.c.l.b16 %v763
    %v803 = vunpack.c.l.b16 %v764
    %v804 = vunpack.c.l.b16 %v765
    %v805 = vunpack.c.l.b16 %v766
    %v806 = vunpack.c.l.b16 %v767
    %v807 = vunpack.c.l.b16 %v768
    %v808 = vunpack.c.l.b16 %v769
    %v809 = vunpack.c.l.b16 %v770
    %v810 = vpack.c.b16 %v795, %v794
    %v811 = vpack.c.b16 %v797, %v796
    %v812 = vpack.c.b16 %v799, %v798
    %v813 = vpack.c.b16 %v801, %v800
    %v814 = vpack.c.b16 %v803, %v802
    %v815 = vpack.c.b16 %v805, %v804
    %v816 = vpack.c.b16 %v807, %v806
    %v817 = vpack.c.b16 %v809, %v808
    %826 = vmatpush.bf16.msra.mxu0 %v817
    %827 = vmatpush.bf16.msra.mxu0 %v816
    %828 = vmatpush.bf16.msra.mxu0 %v815
    %829 = vmatpush.bf16.msra.mxu0 %v814
    %830 = vmatpush.bf16.msra.mxu0 %v813
    %831 = vmatpush.bf16.msra.mxu0 %v812
    %832 = vmatpush.bf16.msra.mxu0 %v811
    %833 = vmatpush.bf16.msra.mxu0 %v810
    %834 = vmatmul.bf16.gmra.mxu0 %v773
    %v835 = vpop.f32.mrf.mxu0
    %v836 = vadd.f32 %v776, %v835
    %v837 = vpop.f32.mrf.mxu0
    %v838 = vadd.f32 %v776, %v837
    %839 = vdwg.mxu0
    %v840 = vmax.f32 %v836, 0.0
    %v841 = vmax.f32 %v838, 0.0
    %v842 = vadd.f32 %v840, %v734
    %v843 = vadd.f32 %v841, %v735
    %844 = vmatpush.bf16.msra.mxu0 %v817
    %845 = vmatpush.bf16.msra.mxu0 %v816
    %846 = vmatpush.bf16.msra.mxu0 %v815
    %847 = vmatpush.bf16.msra.mxu0 %v814
    %848 = vmatpush.bf16.msra.mxu0 %v813
    %849 = vmatpush.bf16.msra.mxu0 %v812
    %850 = vmatpush.bf16.msra.mxu0 %v811
    %851 = vmatpush.bf16.msra.mxu0 %v810
    %852 = vmatmul.bf16.gmra.mxu0 %v774
    %v853 = vpop.f32.mrf.mxu0
    %v854 = vadd.f32 %v776, %v853
    %v855 = vpop.f32.mrf.mxu0
    %v856 = vadd.f32 %v776, %v855
    %857 = vdwg.mxu0
    %v858 = vmax.f32 %v854, 0.0
    %v859 = vmax.f32 %v856, 0.0
    %v860 = vadd.f32 %v858, %v752
    %v861 = vadd.f32 %v859, %v753
    %s862 = scalar_lea.vmem [#allocation2], 448
    %v863 = vld [vmem:[%s862] sm:$0xf]
    %v864 = vld [vmem:[%s862 + $0x4] sm:$0xf]
    %v865 = vld [vmem:[%s862 + $0x8] sm:$0xf]
    %v866 = vld [vmem:[%s862 + $0xc] sm:$0xf]
    %v867 = vld [vmem:[%s862 + $0x10] sm:$0xf]
    %v868 = vld [vmem:[%s862 + $0x14] sm:$0xf]
    %v869 = vld [vmem:[%s862 + $0x18] sm:$0xf]
    %v870 = vld [vmem:[%s862 + $0x1c] sm:$0xf]
    %v871 = vld [vmem:[%s862 + $0x20] sm:$0xf]
    %v872 = vld [vmem:[%s862 + $0x24] sm:$0xf]
    %v873 = vld [vmem:[%s862 + $0x28] sm:$0xf]
    %v874 = vld [vmem:[%s862 + $0x2c] sm:$0xf]
    %v875 = vld [vmem:[%s862 + $0x30] sm:$0xf]
    %v876 = vld [vmem:[%s862 + $0x34] sm:$0xf]
    %v877 = vld [vmem:[%s862 + $0x38] sm:$0xf]
    %v878 = vld [vmem:[%s862 + $0x3c] sm:$0xf]
    %s879 = scalar_lea.vmem %s4, 7
    %v880 = vld [vmem:[%s879] sm:$0x1]
    %v881 = vpack.c.bf16 %v843, %v842
    %v882 = vpack.c.bf16 %v861, %v860
    %v884 = vperm.slane %v880, 0
    %v902 = vunpack.c.l.b16 %v863
    %v903 = vunpack.c.l.b16 %v864
    %v904 = vunpack.c.l.b16 %v865
    %v905 = vunpack.c.l.b16 %v866
    %v906 = vunpack.c.l.b16 %v867
    %v907 = vunpack.c.l.b16 %v868
    %v908 = vunpack.c.l.b16 %v869
    %v909 = vunpack.c.l.b16 %v870
    %v910 = vunpack.c.l.b16 %v871
    %v911 = vunpack.c.l.b16 %v872
    %v912 = vunpack.c.l.b16 %v873
    %v913 = vunpack.c.l.b16 %v874
    %v914 = vunpack.c.l.b16 %v875
    %v915 = vunpack.c.l.b16 %v876
    %v916 = vunpack.c.l.b16 %v877
    %v917 = vunpack.c.l.b16 %v878
    %v918 = vpack.c.b16 %v903, %v902
    %v919 = vpack.c.b16 %v905, %v904
    %v920 = vpack.c.b16 %v907, %v906
    %v921 = vpack.c.b16 %v909, %v908
    %v922 = vpack.c.b16 %v911, %v910
    %v923 = vpack.c.b16 %v913, %v912
    %v924 = vpack.c.b16 %v915, %v914
    %v925 = vpack.c.b16 %v917, %v916
    %934 = vmatpush.bf16.msra.mxu0 %v925
    %935 = vmatpush.bf16.msra.mxu0 %v924
    %936 = vmatpush.bf16.msra.mxu0 %v923
    %937 = vmatpush.bf16.msra.mxu0 %v922
    %938 = vmatpush.bf16.msra.mxu0 %v921
    %939 = vmatpush.bf16.msra.mxu0 %v920
    %940 = vmatpush.bf16.msra.mxu0 %v919
    %941 = vmatpush.bf16.msra.mxu0 %v918
    %942 = vmatmul.bf16.gmra.mxu0 %v881
    %v943 = vpop.f32.mrf.mxu0
    %v944 = vadd.f32 %v884, %v943
    %v945 = vpop.f32.mrf.mxu0
    %v946 = vadd.f32 %v884, %v945
    %947 = vdwg.mxu0
    %v948 = vmax.f32 %v944, 0.0
    %v949 = vmax.f32 %v946, 0.0
    %v950 = vadd.f32 %v948, %v842
    %v951 = vadd.f32 %v949, %v843
    %952 = vmatpush.bf16.msra.mxu0 %v925
    %953 = vmatpush.bf16.msra.mxu0 %v924
    %954 = vmatpush.bf16.msra.mxu0 %v923
    %955 = vmatpush.bf16.msra.mxu0 %v922
    %956 = vmatpush.bf16.msra.mxu0 %v921
    %957 = vmatpush.bf16.msra.mxu0 %v920
    %958 = vmatpush.bf16.msra.mxu0 %v919
    %959 = vmatpush.bf16.msra.mxu0 %v918
    %960 = vmatmul.bf16.gmra.mxu0 %v882
    %v961 = vpop.f32.mrf.mxu0
    %v962 = vadd.f32 %v884, %v961
    %v963 = vpop.f32.mrf.mxu0
    %v964 = vadd.f32 %v884, %v963
    %965 = vdwg.mxu0
    %v966 = vmax.f32 %v962, 0.0
    %v967 = vmax.f32 %v964, 0.0
    %v968 = vadd.f32 %v966, %v860
    %v969 = vadd.f32 %v967, %v861
    %v970 = vld [vmem:[%s5] sm:$0xf]
    %v971 = vld [vmem:[%s5 + $0x4] sm:$0xf]
    %v972 = vld [vmem:[%s5 + $0x8] sm:$0xf]
    %v973 = vld [vmem:[%s5 + $0xc] sm:$0xf]
    %v974 = vld [vmem:[%s5 + $0x10] sm:$0xf]
    %v975 = vld [vmem:[%s5 + $0x14] sm:$0xf]
    %v976 = vld [vmem:[%s5 + $0x18] sm:$0xf]
    %v977 = vld [vmem:[%s5 + $0x1c] sm:$0xf]
    %v978 = vld [vmem:[%s5 + $0x20] sm:$0xf]
    %v979 = vld [vmem:[%s5 + $0x24] sm:$0xf]
    %v980 = vld [vmem:[%s5 + $0x28] sm:$0xf]
    %v981 = vld [vmem:[%s5 + $0x2c] sm:$0xf]
    %v982 = vld [vmem:[%s5 + $0x30] sm:$0xf]
    %v983 = vld [vmem:[%s5 + $0x34] sm:$0xf]
    %v984 = vld [vmem:[%s5 + $0x38] sm:$0xf]
    %v985 = vld [vmem:[%s5 + $0x3c] sm:$0xf]
    %v986 = vld [vmem:[%s6] sm:$0x1]
    %v987 = vpack.c.bf16 %v951, %v950
    %v989 = vperm.slane %v986, 0
    %v1007 = vunpack.c.l.b16 %v970
    %v1008 = vunpack.c.l.b16 %v971
    %v1009 = vunpack.c.l.b16 %v972
    %v1010 = vunpack.c.l.b16 %v973
    %v1011 = vunpack.c.l.b16 %v974
    %v1012 = vunpack.c.l.b16 %v975
    %v1013 = vunpack.c.l.b16 %v976
    %v1014 = vunpack.c.l.b16 %v977
    %v1015 = vunpack.c.l.b16 %v978
    %v1016 = vunpack.c.l.b16 %v979
    %v1017 = vunpack.c.l.b16 %v980
    %v1018 = vunpack.c.l.b16 %v981
    %v1019 = vunpack.c.l.b16 %v982
    %v1020 = vunpack.c.l.b16 %v983
    %v1021 = vunpack.c.l.b16 %v984
    %v1022 = vunpack.c.l.b16 %v985
    %v1023 = vpack.c.b16 %v1008, %v1007
    %v1024 = vpack.c.b16 %v1010, %v1009
    %v1025 = vpack.c.b16 %v1012, %v1011
    %v1026 = vpack.c.b16 %v1014, %v1013
    %v1027 = vpack.c.b16 %v1016, %v1015
    %v1028 = vpack.c.b16 %v1018, %v1017
    %v1029 = vpack.c.b16 %v1020, %v1019
    %v1030 = vpack.c.b16 %v1022, %v1021
    %1039 = vmatpush.bf16.msra.mxu0 %v1030
    %1040 = vmatpush.bf16.msra.mxu0 %v1029
    %1041 = vmatpush.bf16.msra.mxu0 %v1028
    %1042 = vmatpush.bf16.msra.mxu0 %v1027
    %1043 = vmatpush.bf16.msra.mxu0 %v1026
    %1044 = vmatpush.bf16.msra.mxu0 %v1025
    %1045 = vmatpush.bf16.msra.mxu0 %v1024
    %1046 = vmatpush.bf16.msra.mxu0 %v1023
    %1047 = vmatmul.bf16.gmra.mxu0 %v987
    %v1048 = vpop.f32.mrf.mxu0
    %v1049 = vadd.f32 %v989, %v1048
    %v1050 = vpop.f32.mrf.mxu0
    %v1051 = vadd.f32 %v989, %v1050
    %1052 = vdwg.mxu0
    %vm1053 = vcmask 31744
    %1054 = vst.msk [vmem:[%s7] sm:$0xff] %vm1053, %v1049
    %1055 = vst.msk [vmem:[%s7 + $0x8] sm:$0xff] %vm1053, %v1051
    %v1056 = vpack.c.bf16 %v969, %v968
    %1057 = vmatpush.bf16.msra.mxu0 %v1030
    %1058 = vmatpush.bf16.msra.mxu0 %v1029
    %1059 = vmatpush.bf16.msra.mxu0 %v1028
    %1060 = vmatpush.bf16.msra.mxu0 %v1027
    %1061 = vmatpush.bf16.msra.mxu0 %v1026
    %1062 = vmatpush.bf16.msra.mxu0 %v1025
    %1063 = vmatpush.bf16.msra.mxu0 %v1024
    %1064 = vmatpush.bf16.msra.mxu0 %v1023
    %1065 = vmatmul.bf16.gmra.mxu0 %v1056
    %v1066 = vpop.f32.mrf.mxu0
    %v1067 = vadd.f32 %v989, %v1066
    %v1068 = vpop.f32.mrf.mxu0
    %v1069 = vadd.f32 %v989, %v1068
    %1070 = vdwg.mxu0
    %1071 = vst.msk [vmem:[%s7 + $0x10] sm:$0xff] %vm1053, %v1067
    %1072 = vst.msk [vmem:[%s7 + $0x18] sm:$0xff] %vm1053, %v1069
    // Predicated region
    $region34: #{tpu_custom_call.1} parent=1 // pred_check
      _
    $region35: #{tpu_custom_call.1} parent=1 // pred_check_branch
      %1074 = sbr.rel (0) target = $region37
    $region36: #{tpu_custom_call.1} parent=1 // pred_region
      _
    $region37: #{tpu_custom_call.1} parent=1 // pred_fallthru
      _
    // Predicated region
    $region38: #{tpu_custom_call.1} parent=1 // pred_check
      _
    $region39: #{tpu_custom_call.1} parent=1 // pred_check_branch
      %1076 = sbr.rel (0) target = $region41
    $region40: #{tpu_custom_call.1} parent=1 // pred_region
      _
    $region41: #{tpu_custom_call.1} parent=1 // pred_fallthru
      _
    %1077 = vsyncpa [#allocation3], 1

</llo_original>
